<compile_context>
chip_gen: v7x
topology: tpu7x:2x2x1
jax: 0.10.0
libtpu: 0.0.40
codegen_flags: <defaults>
</compile_context>

<pallas_src>
import functools

import jax
import jax.numpy as jnp
from jax.experimental import pallas as pl
from jax.experimental.pallas import tpu as pltpu

KS = 4                 # kernel size
PAD_L, PAD_R = 1, 2    # PyTorch 'same' padding for k=4 (left, right)
LANE = 128             # TPU lane width


def convblock_kernel(xc_ref, xn_ref, w1_ref, b1_ref, w2a_ref, b2a_ref,
                     w2b_ref, b2b_ref, out_ref, *, seq_len):
    """One (batch, L-tile) block per grid step.  Channels-first layout.

    xc_ref:  (1, Cin, tL)    current tile of the right-shifted (by 2) padded input
    xn_ref:  (1, Cin, 128)   first 128 columns of the next tile (right halo)
    w1_ref:  (Cout, 4*Cin)   conv1 weight, im2col layout  [co, k*Cin + ci]
    b1_ref:  (Cout, 1)
    w2a_ref: (Cout, 4*Cout)  conv2 weight, first GLU half (im2col layout)
    b2a_ref: (Cout, 1)
    w2b_ref: (Cout, 4*Cout)  conv2 weight, second GLU half
    b2b_ref: (Cout, 1)
    out_ref: (1, Cout, tL)
    """
    j = pl.program_id(1)
    tl = out_ref.shape[2]
    width = tl + LANE            # tile + right halo

    xc = xc_ref[0]                                      # (Cin, tL)
    xn = xn_ref[0]                                      # (Cin, 128)
    catx = jnp.concatenate([xc, xn], axis=-1)           # (Cin, tL+128)
    # Column q of catx is x[global j*tl + q - 2] (zeros outside the valid range).

    # ---- conv1: fuse the 4 taps into ONE MXU matmul via an im2col operand. ----
    # roll(x, width-k) puts x[:, q+k] at column q (XLU lane rotation, no copies).
    # TODO(synk): on v6e/v7x, cast catx/h and the weights to bf16 (keep f32
    # accumulation via preferred_element_type) for the native MXU rate; kept f32
    # here for exact parity with the f32 reference.
    im1 = jnp.concatenate(
        [catx] + [pltpu.roll(catx, shift=width - k, axis=1) for k in range(1, KS)],
        axis=0)                                          # (4*Cin, tL+128)
    h = jnp.dot(w1_ref[...], im1, preferred_element_type=jnp.float32)
    h = jnp.maximum(h + b1_ref[...], 0.0)                # (Cout, tL+128), ReLU

    # Column q of h is conv1/ReLU at global position m = j*tl + q - 1.
    # conv2's 'same' padding pads the *activation* with zeros outside [0, seq_len):
    q = jax.lax.broadcasted_iota(jnp.int32, (1, width), 1)
    m = j * tl + q - 1
    h = jnp.where((m >= 0) & (m < seq_len), h, 0.0)

    # ---- conv2 (split into the two GLU halves) + GLU, again one matmul each. ----
    im2 = jnp.concatenate(
        [h[:, :tl]] + [pltpu.roll(h, shift=width - k, axis=1)[:, :tl]
                       for k in range(1, KS)],
        axis=0)                                          # (4*Cout, tL)
    ga = jnp.dot(w2a_ref[...], im2, preferred_element_type=jnp.float32) + b2a_ref[...]
    gb = jnp.dot(w2b_ref[...], im2, preferred_element_type=jnp.float32) + b2b_ref[...]

    out_ref[0] = (ga * jax.nn.sigmoid(gb)).astype(out_ref.dtype)   # lane-dense store


def conv_block(x_ncl, w1, b1, w2, b2):
    """Forward pass matching the PyTorch ConvBlock.

    x_ncl: (N, Cin, L) float32
    w1:    (Cout, Cin, 4),    b1: (Cout,)
    w2:    (2*Cout, Cout, 4), b2: (2*Cout,)
    returns (N, Cout, L)
    """
    N, c_in, L = x_ncl.shape
    c_out = w1.shape[0]

    # Sequence tiling: pad L up to a multiple of 128 (lane-dense blocks) and pick the
    # largest tile in {512, 256, 128} that divides it.
    l_pad = ((L + LANE - 1) // LANE) * LANE
    tl = next(t for t in (512, 256, 128) if t <= l_pad and l_pad % t == 0)
    n_tiles = l_pad // tl
    blk = tl // LANE

    # Shift the input right by 2 along L so each tile plus a 128-column halo from the
    # next tile covers the full receptive field [l-2, l+4) of the two stacked convs.
    # The trailing zero tile lets the halo read of the last tile stay in bounds.
    # TODO(synk): this padded copy is one extra HBM pass over x; it could be removed
    # with a prev/cur/next 3-block halo scheme at the cost of a third DMA stream.
    lx = (n_tiles + 1) * tl
    x_sh = jnp.pad(x_ncl, ((0, 0), (0, 0), (2, lx - L - 2)))

    # im2col weight layouts; conv2 split into the two GLU halves in the wrapper.
    w1_f = jnp.transpose(w1, (0, 2, 1)).reshape(c_out, KS * c_in)        # (Cout, 4*Cin)
    w2a = jnp.transpose(w2[:c_out], (0, 2, 1)).reshape(c_out, KS * c_out)
    w2b = jnp.transpose(w2[c_out:], (0, 2, 1)).reshape(c_out, KS * c_out)
    b1_2d = b1[:, None]
    b2a = b2[:c_out, None]
    b2b = b2[c_out:, None]

    out_pad = pl.pallas_call(
        functools.partial(convblock_kernel, seq_len=L),
        out_shape=jax.ShapeDtypeStruct((N, c_out, l_pad), x_ncl.dtype),
        grid=(N, n_tiles),
        in_specs=[
            pl.BlockSpec((1, c_in, tl), lambda n, j: (n, 0, j)),                    # cur tile
            pl.BlockSpec((1, c_in, LANE), lambda n, j: (n, 0, (j + 1) * blk)),      # right halo
            pl.BlockSpec((c_out, KS * c_in), lambda n, j: (0, 0)),                  # w1
            pl.BlockSpec((c_out, 1), lambda n, j: (0, 0)),                          # b1
            pl.BlockSpec((c_out, KS * c_out), lambda n, j: (0, 0)),                 # w2 (GLU a)
            pl.BlockSpec((c_out, 1), lambda n, j: (0, 0)),                          # b2 (GLU a)
            pl.BlockSpec((c_out, KS * c_out), lambda n, j: (0, 0)),                 # w2 (GLU b)
            pl.BlockSpec((c_out, 1), lambda n, j: (0, 0)),                          # b2 (GLU b)
        ],
        out_specs=pl.BlockSpec((1, c_out, tl), lambda n, j: (n, 0, j)),
        compiler_params=pltpu.CompilerParams(
            dimension_semantics=("parallel", "parallel"),
            vmem_limit_bytes=48 * 1024 * 1024),
    )(x_sh, x_sh, w1_f, b1_2d, w2a, b2a, w2b, b2b)

    return out_pad if l_pad == L else out_pad[:, :, :L]


def ref_forward(x, w1, b1, w2, b2):
    """Pure-JAX reference replicating PyTorch semantics (NCL layout)."""
    dn = ('NCH', 'OIH', 'NCH')
    y = jax.lax.conv_general_dilated(
        x, w1, window_strides=(1,), padding=[(PAD_L, PAD_R)],
        dimension_numbers=dn) + b1[None, :, None]
    y = jnp.maximum(y, 0.0)
    z = jax.lax.conv_general_dilated(
        y, w2, window_strides=(1,), padding=[(PAD_L, PAD_R)],
        dimension_numbers=dn) + b2[None, :, None]
    c = z.shape[1] // 2
    return z[:, :c] * jax.nn.sigmoid(z[:, c:])


if __name__ == "__main__":
    # Small shapes consistent with the module's forward: x is (N, Cin, L).
    N, C_IN, C_OUT, L = 2, 4, 8, 16

    key = jax.random.PRNGKey(0)
    kx, k1, k2, k3, k4 = jax.random.split(key, 5)

    x = jax.random.normal(kx, (N, C_IN, L), jnp.float32)
    # Deterministic synthetic parameters (shapes from the Conv1d definitions).
    w1 = jax.random.normal(k1, (C_OUT, C_IN, KS), jnp.float32) * 0.2
    b1 = jax.random.normal(k2, (C_OUT,), jnp.float32) * 0.1
    w2 = jax.random.normal(k3, (2 * C_OUT, C_OUT, KS), jnp.float32) * 0.2
    b2 = jax.random.normal(k4, (2 * C_OUT,), jnp.float32) * 0.1

    out = jax.block_until_ready(conv_block(x, w1, b1, w2, b2))
    ref = jax.block_until_ready(ref_forward(x, w1, b1, w2, b2))

    assert out.shape == (N, C_OUT, L), out.shape
    assert jnp.allclose(out, ref, rtol=1e-5, atol=1e-5), float(
        jnp.max(jnp.abs(out - ref)))

    print("KERNEL_OK")
</pallas_src>

<mosaic_0001>
module attributes {stable_mosaic.version = 11 : i64} {
  func.func @convblock_kernel(%arg0: i32, %arg1: i32, %arg2: memref<1x4x128xf32, #tpu.memory_space<vmem>>, %arg3: memref<1x4x128xf32, #tpu.memory_space<vmem>>, %arg4: memref<8x16xf32, #tpu.memory_space<vmem>>, %arg5: memref<8x1xf32, #tpu.memory_space<vmem>>, %arg6: memref<8x32xf32, #tpu.memory_space<vmem>>, %arg7: memref<8x1xf32, #tpu.memory_space<vmem>>, %arg8: memref<8x32xf32, #tpu.memory_space<vmem>>, %arg9: memref<8x1xf32, #tpu.memory_space<vmem>>, %arg10: memref<1x8x128xf32, #tpu.memory_space<vmem>>) attributes {dimension_semantics = [#tpu.dimension_semantics<parallel>, #tpu.dimension_semantics<parallel>], iteration_bounds = array<i64: 2, 1>, scalar_prefetch = 0 : i64, scratch_operands = 0 : i64, tpu.core_type = #tpu.core_type<tc>, window_params = [{transform_indices = @transform_0, window_bounds = array<i64: 1, 4, 128>}, {transform_indices = @transform_1, window_bounds = array<i64: 1, 4, 128>}, {pipeline_mode = #tpu.pipeline_mode<synchronous>, transform_indices = @transform_2, window_bounds = array<i64: 8, 16>}, {pipeline_mode = #tpu.pipeline_mode<synchronous>, transform_indices = @transform_3, window_bounds = array<i64: 8, 1>}, {pipeline_mode = #tpu.pipeline_mode<synchronous>, transform_indices = @transform_4, window_bounds = array<i64: 8, 32>}, {pipeline_mode = #tpu.pipeline_mode<synchronous>, transform_indices = @transform_5, window_bounds = array<i64: 8, 1>}, {pipeline_mode = #tpu.pipeline_mode<synchronous>, transform_indices = @transform_6, window_bounds = array<i64: 8, 32>}, {pipeline_mode = #tpu.pipeline_mode<synchronous>, transform_indices = @transform_7, window_bounds = array<i64: 8, 1>}, {transform_indices = @transform_8, window_bounds = array<i64: 1, 8, 128>}]} {
    %c0 = arith.constant 0 : index
    %c0_0 = arith.constant 0 : index
    %c0_1 = arith.constant 0 : index
    %0 = vector.load %arg2[%c0, %c0_0, %c0_1] : memref<1x4x128xf32, #tpu.memory_space<vmem>>, vector<1x4x128xf32>
    %1 = vector.shape_cast %0 : vector<1x4x128xf32> to vector<4x128xf32>
    %c0_2 = arith.constant 0 : index
    %c0_3 = arith.constant 0 : index
    %c0_4 = arith.constant 0 : index
    %2 = vector.load %arg3[%c0_2, %c0_3, %c0_4] : memref<1x4x128xf32, #tpu.memory_space<vmem>>, vector<1x4x128xf32>
    %3 = vector.shape_cast %2 : vector<1x4x128xf32> to vector<4x128xf32>
    %4 = tpu.concatenate %1, %3 in 1 : vector<4x128xf32>, vector<4x128xf32> -> vector<4x256xf32>
    %c255_i32 = arith.constant 255 : i32
    %5 = tpu.dynamic_rotate %4 by %c255_i32 dim 1 : vector<4x256xf32>, i32 -> vector<4x256xf32>
    %c254_i32 = arith.constant 254 : i32
    %6 = tpu.dynamic_rotate %4 by %c254_i32 dim 1 : vector<4x256xf32>, i32 -> vector<4x256xf32>
    %c253_i32 = arith.constant 253 : i32
    %7 = tpu.dynamic_rotate %4 by %c253_i32 dim 1 : vector<4x256xf32>, i32 -> vector<4x256xf32>
    %8 = tpu.concatenate %4, %5, %6, %7 in 0 : vector<4x256xf32>, vector<4x256xf32>, vector<4x256xf32>, vector<4x256xf32> -> vector<16x256xf32>
    %c0_5 = arith.constant 0 : index
    %c0_6 = arith.constant 0 : index
    %9 = vector.load %arg4[%c0_5, %c0_6] : memref<8x16xf32, #tpu.memory_space<vmem>>, vector<8x16xf32>
    %cst = arith.constant dense<0.000000e+00> : vector<8x256xf32>
    %10 = tpu.matmul %9, %8, %cst {dimension_numbers = #tpu.dot_dimension_numbers<[1], [0], [0], [1], [0, 0, 1, 1], [], []>} : vector<8x16xf32>, vector<16x256xf32>, vector<8x256xf32> -> vector<8x256xf32>
    %c0_7 = arith.constant 0 : index
    %c0_8 = arith.constant 0 : index
    %11 = vector.load %arg5[%c0_7, %c0_8] : memref<8x1xf32, #tpu.memory_space<vmem>>, vector<8x1xf32>
    %12 = vector.broadcast %11 : vector<8x1xf32> to vector<8x256xf32>
    %13 = arith.addf %10, %12 : vector<8x256xf32>
    %cst_9 = arith.constant 0.000000e+00 : f32
    %14 = vector.broadcast %cst_9 : f32 to vector<8x256xf32>
    %15 = arith.maximumf %13, %14 : vector<8x256xf32>
    %16 = tpu.iota {dimensions = array<i32: 1>} : vector<1x256xi32>
    %c128_i32 = arith.constant 128 : i32
    %17 = arith.muli %arg1, %c128_i32 : i32
    %18 = vector.broadcast %17 : i32 to vector<1x256xi32>
    %19 = arith.addi %18, %16 : vector<1x256xi32>
    %c1_i32 = arith.constant 1 : i32
    %20 = vector.broadcast %c1_i32 : i32 to vector<1x256xi32>
    %21 = arith.subi %19, %20 : vector<1x256xi32>
    %c0_i32 = arith.constant 0 : i32
    %22 = vector.broadcast %c0_i32 : i32 to vector<1x256xi32>
    %23 = arith.cmpi sge, %21, %22 : vector<1x256xi32>
    %c16_i32 = arith.constant 16 : i32
    %24 = vector.broadcast %c16_i32 : i32 to vector<1x256xi32>
    %25 = arith.cmpi slt, %21, %24 : vector<1x256xi32>
    %26 = arith.andi %23, %25 : vector<1x256xi1>
    %cst_10 = arith.constant 0.000000e+00 : f32
    %27 = vector.shape_cast %26 : vector<1x256xi1> to vector<1x256xi1>
    %28 = vector.broadcast %27 : vector<1x256xi1> to vector<8x256xi1>
    %29 = vector.broadcast %cst_10 : f32 to vector<8x256xf32>
    %30 = arith.select %28, %15, %29 : vector<8x256xi1>, vector<8x256xf32>
    %31 = vector.extract_strided_slice %30 {offsets = [0, 0], sizes = [8, 128], strides = [1, 1]} : vector<8x256xf32> to vector<8x128xf32>
    %c255_i32_11 = arith.constant 255 : i32
    %32 = tpu.dynamic_rotate %30 by %c255_i32_11 dim 1 : vector<8x256xf32>, i32 -> vector<8x256xf32>
    %33 = vector.extract_strided_slice %32 {offsets = [0, 0], sizes = [8, 128], strides = [1, 1]} : vector<8x256xf32> to vector<8x128xf32>
    %c254_i32_12 = arith.constant 254 : i32
    %34 = tpu.dynamic_rotate %30 by %c254_i32_12 dim 1 : vector<8x256xf32>, i32 -> vector<8x256xf32>
    %35 = vector.extract_strided_slice %34 {offsets = [0, 0], sizes = [8, 128], strides = [1, 1]} : vector<8x256xf32> to vector<8x128xf32>
    %c253_i32_13 = arith.constant 253 : i32
    %36 = tpu.dynamic_rotate %30 by %c253_i32_13 dim 1 : vector<8x256xf32>, i32 -> vector<8x256xf32>
    %37 = vector.extract_strided_slice %36 {offsets = [0, 0], sizes = [8, 128], strides = [1, 1]} : vector<8x256xf32> to vector<8x128xf32>
    %38 = tpu.concatenate %31, %33, %35, %37 in 0 : vector<8x128xf32>, vector<8x128xf32>, vector<8x128xf32>, vector<8x128xf32> -> vector<32x128xf32>
    %c0_14 = arith.constant 0 : index
    %c0_15 = arith.constant 0 : index
    %39 = vector.load %arg6[%c0_14, %c0_15] : memref<8x32xf32, #tpu.memory_space<vmem>>, vector<8x32xf32>
    %cst_16 = arith.constant dense<0.000000e+00> : vector<8x128xf32>
    %40 = tpu.matmul %39, %38, %cst_16 {dimension_numbers = #tpu.dot_dimension_numbers<[1], [0], [0], [1], [0, 0, 1, 1], [], []>} : vector<8x32xf32>, vector<32x128xf32>, vector<8x128xf32> -> vector<8x128xf32>
    %c0_17 = arith.constant 0 : index
    %c0_18 = arith.constant 0 : index
    %41 = vector.load %arg7[%c0_17, %c0_18] : memref<8x1xf32, #tpu.memory_space<vmem>>, vector<8x1xf32>
    %42 = vector.broadcast %41 : vector<8x1xf32> to vector<8x128xf32>
    %43 = arith.addf %40, %42 : vector<8x128xf32>
    %c0_19 = arith.constant 0 : index
    %c0_20 = arith.constant 0 : index
    %44 = vector.load %arg8[%c0_19, %c0_20] : memref<8x32xf32, #tpu.memory_space<vmem>>, vector<8x32xf32>
    %cst_21 = arith.constant dense<0.000000e+00> : vector<8x128xf32>
    %45 = tpu.matmul %44, %38, %cst_21 {dimension_numbers = #tpu.dot_dimension_numbers<[1], [0], [0], [1], [0, 0, 1, 1], [], []>} : vector<8x32xf32>, vector<32x128xf32>, vector<8x128xf32> -> vector<8x128xf32>
    %c0_22 = arith.constant 0 : index
    %c0_23 = arith.constant 0 : index
    %46 = vector.load %arg9[%c0_22, %c0_23] : memref<8x1xf32, #tpu.memory_space<vmem>>, vector<8x1xf32>
    %47 = vector.broadcast %46 : vector<8x1xf32> to vector<8x128xf32>
    %48 = arith.addf %45, %47 : vector<8x128xf32>
    %49 = arith.negf %48 : vector<8x128xf32>
    %50 = math.exp %49 : vector<8x128xf32>
    %cst_24 = arith.constant 1.000000e+00 : f32
    %51 = vector.broadcast %cst_24 : f32 to vector<8x128xf32>
    %52 = arith.addf %51, %50 : vector<8x128xf32>
    %53 = arith.divf %51, %52 : vector<8x128xf32>
    %54 = arith.mulf %43, %53 : vector<8x128xf32>
    %c0_25 = arith.constant 0 : index
    %c0_26 = arith.constant 0 : index
    %c0_27 = arith.constant 0 : index
    %55 = vector.load %arg10[%c0_25, %c0_26, %c0_27] : memref<1x8x128xf32, #tpu.memory_space<vmem>>, vector<1x8x128xf32>
    %56 = vector.shape_cast %55 : vector<1x8x128xf32> to vector<8x128xf32>
    %57 = vector.shape_cast %54 : vector<8x128xf32> to vector<1x8x128xf32>
    tpu.vector_store %arg10[%c0_25, %c0_26, %c0_27], %57 {strides = array<i32>} : memref<1x8x128xf32, #tpu.memory_space<vmem>>, vector<1x8x128xf32>,
    return
  }
  func.func @transform_0(%arg0: i32, %arg1: i32) -> (i32, i32, i32) {
    %c0_i32 = arith.constant 0 : i32
    %c0_i32_0 = arith.constant 0 : i32
    return %arg0, %c0_i32, %arg1 : i32, i32, i32
  }
  func.func @transform_1(%arg0: i32, %arg1: i32) -> (i32, i32, i32) {
    %c1_i32 = arith.constant 1 : i32
    %0 = arith.addi %arg1, %c1_i32 : i32
    %c1_i32_0 = arith.constant 1 : i32
    %1 = arith.muli %0, %c1_i32_0 : i32
    %c0_i32 = arith.constant 0 : i32
    %c0_i32_1 = arith.constant 0 : i32
    return %arg0, %c0_i32, %1 : i32, i32, i32
  }
  func.func @transform_2(%arg0: i32, %arg1: i32) -> (i32, i32) {
    %c0_i32 = arith.constant 0 : i32
    %c0_i32_0 = arith.constant 0 : i32
    %c0_i32_1 = arith.constant 0 : i32
    return %c0_i32, %c0_i32_0 : i32, i32
  }
  func.func @transform_3(%arg0: i32, %arg1: i32) -> (i32, i32) {
    %c0_i32 = arith.constant 0 : i32
    %c0_i32_0 = arith.constant 0 : i32
    %c0_i32_1 = arith.constant 0 : i32
    return %c0_i32, %c0_i32_0 : i32, i32
  }
  func.func @transform_4(%arg0: i32, %arg1: i32) -> (i32, i32) {
    %c0_i32 = arith.constant 0 : i32
    %c0_i32_0 = arith.constant 0 : i32
    %c0_i32_1 = arith.constant 0 : i32
    return %c0_i32, %c0_i32_0 : i32, i32
  }
  func.func @transform_5(%arg0: i32, %arg1: i32) -> (i32, i32) {
    %c0_i32 = arith.constant 0 : i32
    %c0_i32_0 = arith.constant 0 : i32
    %c0_i32_1 = arith.constant 0 : i32
    return %c0_i32, %c0_i32_0 : i32, i32
  }
  func.func @transform_6(%arg0: i32, %arg1: i32) -> (i32, i32) {
    %c0_i32 = arith.constant 0 : i32
    %c0_i32_0 = arith.constant 0 : i32
    %c0_i32_1 = arith.constant 0 : i32
    return %c0_i32, %c0_i32_0 : i32, i32
  }
  func.func @transform_7(%arg0: i32, %arg1: i32) -> (i32, i32) {
    %c0_i32 = arith.constant 0 : i32
    %c0_i32_0 = arith.constant 0 : i32
    %c0_i32_1 = arith.constant 0 : i32
    return %c0_i32, %c0_i32_0 : i32, i32
  }
  func.func @transform_8(%arg0: i32, %arg1: i32) -> (i32, i32, i32) {
    %c0_i32 = arith.constant 0 : i32
    %c0_i32_0 = arith.constant 0 : i32
    return %arg0, %c0_i32, %arg1 : i32, i32, i32
  }
}

</mosaic_0001>

<llo_original>
// kernel: tpu_custom_call.1
$region0: #{tpu_custom_call.1}
  #allocation0 [shape = 'u32[]', space=smem, size = 0x4, offset = 0x4, fixed_abs, tag = 'smem constant byte address 0x4 - core index']
  #allocation1 [shape = 'u32[144,128]{1,0:T(1,128)}', space=vmem, size = 0x12000, scoped, tag = 'internal scratch']
  %s0 = inlined_call_operand.vmem [shape: f32[2,4,256], index: 0, kind: input, shape index: {}]
  %s1 = inlined_call_operand.hbm [shape: f32[2,4,256], index: 1, kind: input, shape index: {}]
  %s2 = inlined_call_operand.vmem [shape: f32[8,16], index: 2, kind: input, shape index: {}]
  %s3 = inlined_call_operand.vmem [shape: f32[8,1], index: 3, kind: input, shape index: {}]
  %s4 = inlined_call_operand.vmem [shape: f32[8,32], index: 4, kind: input, shape index: {}]
  %s5 = inlined_call_operand.vmem [shape: f32[8,1], index: 5, kind: input, shape index: {}]
  %s6 = inlined_call_operand.vmem [shape: f32[8,32], index: 6, kind: input, shape index: {}]
  %s7 = inlined_call_operand.vmem [shape: f32[8,1], index: 7, kind: input, shape index: {}]
  %s8 = inlined_call_operand.hbm [shape: f32[2,8,128], index: 8, kind: output, shape index: {}]
  %s9 = sld [smem:[#allocation0]]
  $region69: #{tpu_custom_call.1} parent=0
    _
  %s11 = ssub.s32 1, %s9
  %s12 = scalar_select 0, %s11, %s9
  $region1: #{tpu_custom_call.1} parent=0
    #allocation2 [shape = 'u8[4096]{0}', space=vmem, size = 0x1000, scoped, tag = 'input window, operand 1']
    #allocation3 [shape = 's32[2]{0}', space=sflag, size = 0x8, scoped, tag = 'scoped memory for tpu_custom_call.1']
    #allocation4 [shape = 's32[2]{0}', space=sflag, size = 0x8, scoped, tag = 'scoped memory for tpu_custom_call.1']
    #allocation5 [shape = 'u8[8192]{0}', space=vmem, size = 0x2000, scoped, tag = 'output window, operand 0']
    %13 = vsyncpa [#allocation3], 0
    %s14 = scalar_lea.sflag [#allocation3], 1
    %15 = vsyncpa %s14, 0
    %16 = vsyncpa [#allocation4], 0
    %s17 = scalar_lea.sflag [#allocation4], 1
    %18 = vsyncpa %s17, 0
    loop: start=0, step=1, limit=4
    $region2: #{tpu_custom_call.1} parent=1 // loop_pre_header
      _
    $region3: #{tpu_custom_call.1} parent=1 // loop_header
      %s20 = sphi 0, %s24
      %p21 = scmp.ge.s32.totalorder %s20, 4
      %s27 = sphi 0, %s39
      %s28 = sphi 0, %s35
      %s29 = sphi 0, %s27
      %s30 = sphi 0, %s28
      %s31 = sphi 0, %s29
      %s32 = sphi 0, %s30
      %s44 = sphi 0, %s46
      %s47 = sphi 0, %s44
      %s48 = sphi 0, %s47
      %s64 = sphi 0, %s48
      %s74 = sphi 0, %s76
      %s77 = sphi 0, %s74
      %s78 = sphi 0, %s77
      %s94 = sphi 0, %s78
      %s98 = sphi 0, %s98
      %s100 = sphi 0, %s98
      %s101 = sphi 0, %s100
      %s115 = sphi 0, %s101
      %s119 = sphi 0, %s119
      %s121 = sphi 0, %s119
      %s122 = sphi 0, %s121
      %s136 = sphi 0, %s122
      %s140 = sphi 0, %s140
      %s142 = sphi 0, %s140
      %s143 = sphi 0, %s142
      %s157 = sphi 0, %s143
      %s161 = sphi 0, %s161
      %s163 = sphi 0, %s161
      %s164 = sphi 0, %s163
      %s178 = sphi 0, %s164
      %s182 = sphi 0, %s182
      %s184 = sphi 0, %s182
      %s185 = sphi 0, %s184
      %s199 = sphi 0, %s185
      %s203 = sphi 0, %s203
      %s205 = sphi 0, %s203
      %s206 = sphi 0, %s205
      %s220 = sphi 0, %s206
      %s228 = sphi 0, %s230
      %s231 = sphi 0, %s228
      %s232 = sphi 0, %s231
      %s248 = sphi 0, %s232
    $region4: #{tpu_custom_call.1} parent=1 // loop_header_branch
      %23 = sbr.rel (%p21) target = $region8
    $region5: #{tpu_custom_call.1} parent=1 // loop_body
      %s25 = ssub.s32 %s20, 1
      %s26 = ssub.s32 %s20, 2
      %s33 = sadd.s32 1, %s28
      %p34 = scmp.ge.s32.totalorder %s33, 1
      %s35 = scalar_select %p34, 0, %s33
      %s36 = sadd.s32 1, %s27
      %s37 = scalar_select %p34, %s36, %s27
      %p38 = scmp.ge.s32.totalorder %s37, 2
      %s39 = scalar_select %p38, 0, %s37
      %s40 = ssub.s32 %s27, %s39
      %s41 = ssub.s32 %s28, %s35
      %s42 = sor.u32 %s40, %s41
      %p43 = scmp.eq.s32.totalorder %s42, 0
      %s45 = sadd.s32 %s44, 1
      %s46 = scalar_select %p43, %s44, %s45
      %p49 = pneg %p43
      %p50 = scmp.eq.s32.totalorder %s20, 1
      %p51 = por %p49, %p50
      %p52 = scmp.ne.s32.totalorder %s44, %s47
      %p53 = scmp.eq.s32.totalorder %s20, 0
      %p54 = por %p52, %p53
      %p55 = scmp.ne.s32.totalorder %s44, %s47
      %p56 = scmp.eq.s32.totalorder %s25, 1
      %p57 = por %p55, %p56
      %p58 = scmp.ne.s32.totalorder %s47, %s48
      %p59 = scmp.eq.s32.totalorder %s25, 0
      %p60 = por %p58, %p59
      %p61 = scmp.ne.s32.totalorder %s47, %s48
      %p62 = scmp.eq.s32.totalorder %s26, 1
      %p63 = por %p61, %p62
      %p65 = scmp.ne.s32.totalorder %s48, %s64
      %p66 = scmp.eq.s32.totalorder %s26, 0
      %p67 = por %p65, %p66
      %s68 = sadd.s32 %s28, 1
      %s69 = sadd.s32 %s35, 1
      %s70 = ssub.s32 %s27, %s39
      %s71 = ssub.s32 %s68, %s69
      %s72 = sor.u32 %s70, %s71
      %p73 = scmp.eq.s32.totalorder %s72, 0
      %s75 = sadd.s32 %s74, 1
      %s76 = scalar_select %p73, %s74, %s75
      %p79 = pneg %p73
      %p80 = scmp.eq.s32.totalorder %s20, 1
      %p81 = por %p79, %p80
      %p82 = scmp.ne.s32.totalorder %s74, %s77
      %p83 = scmp.eq.s32.totalorder %s20, 0
      %p84 = por %p82, %p83
      %p85 = scmp.ne.s32.totalorder %s74, %s77
      %p86 = scmp.eq.s32.totalorder %s25, 1
      %p87 = por %p85, %p86
      %p88 = scmp.ne.s32.totalorder %s77, %s78
      %p89 = scmp.eq.s32.totalorder %s25, 0
      %p90 = por %p88, %p89
      %p91 = scmp.ne.s32.totalorder %s77, %s78
      %p92 = scmp.eq.s32.totalorder %s26, 1
      %p93 = por %p91, %p92
      %p95 = scmp.ne.s32.totalorder %s78, %s94
      %p96 = scmp.eq.s32.totalorder %s26, 0
      %p97 = por %p95, %p96
      %s99 = sadd.s32 %s98, 1
      %p102 = scmp.eq.s32.totalorder %s20, 1
      %p103 = scmp.ne.s32.totalorder %s98, %s100
      %p104 = scmp.eq.s32.totalorder %s20, 0
      %p105 = por %p103, %p104
      %p106 = scmp.ne.s32.totalorder %s98, %s100
      %p107 = scmp.eq.s32.totalorder %s25, 1
      %p108 = por %p106, %p107
      %p109 = scmp.ne.s32.totalorder %s100, %s101
      %p110 = scmp.eq.s32.totalorder %s25, 0
      %p111 = por %p109, %p110
      %p112 = scmp.ne.s32.totalorder %s100, %s101
      %p113 = scmp.eq.s32.totalorder %s26, 1
      %p114 = por %p112, %p113
      %p116 = scmp.ne.s32.totalorder %s101, %s115
      %p117 = scmp.eq.s32.totalorder %s26, 0
      %p118 = por %p116, %p117
      %s120 = sadd.s32 %s119, 1
      %p123 = scmp.eq.s32.totalorder %s20, 1
      %p124 = scmp.ne.s32.totalorder %s119, %s121
      %p125 = scmp.eq.s32.totalorder %s20, 0
      %p126 = por %p124, %p125
      %p127 = scmp.ne.s32.totalorder %s119, %s121
      %p128 = scmp.eq.s32.totalorder %s25, 1
      %p129 = por %p127, %p128
      %p130 = scmp.ne.s32.totalorder %s121, %s122
      %p131 = scmp.eq.s32.totalorder %s25, 0
      %p132 = por %p130, %p131
      %p133 = scmp.ne.s32.totalorder %s121, %s122
      %p134 = scmp.eq.s32.totalorder %s26, 1
      %p135 = por %p133, %p134
      %p137 = scmp.ne.s32.totalorder %s122, %s136
      %p138 = scmp.eq.s32.totalorder %s26, 0
      %p139 = por %p137, %p138
      %s141 = sadd.s32 %s140, 1
      %p144 = scmp.eq.s32.totalorder %s20, 1
      %p145 = scmp.ne.s32.totalorder %s140, %s142
      %p146 = scmp.eq.s32.totalorder %s20, 0
      %p147 = por %p145, %p146
      %p148 = scmp.ne.s32.totalorder %s140, %s142
      %p149 = scmp.eq.s32.totalorder %s25, 1
      %p150 = por %p148, %p149
      %p151 = scmp.ne.s32.totalorder %s142, %s143
      %p152 = scmp.eq.s32.totalorder %s25, 0
      %p153 = por %p151, %p152
      %p154 = scmp.ne.s32.totalorder %s142, %s143
      %p155 = scmp.eq.s32.totalorder %s26, 1
      %p156 = por %p154, %p155
      %p158 = scmp.ne.s32.totalorder %s143, %s157
      %p159 = scmp.eq.s32.totalorder %s26, 0
      %p160 = por %p158, %p159
      %s162 = sadd.s32 %s161, 1
      %p165 = scmp.eq.s32.totalorder %s20, 1
      %p166 = scmp.ne.s32.totalorder %s161, %s163
      %p167 = scmp.eq.s32.totalorder %s20, 0
      %p168 = por %p166, %p167
      %p169 = scmp.ne.s32.totalorder %s161, %s163
      %p170 = scmp.eq.s32.totalorder %s25, 1
      %p171 = por %p169, %p170
      %p172 = scmp.ne.s32.totalorder %s163, %s164
      %p173 = scmp.eq.s32.totalorder %s25, 0
      %p174 = por %p172, %p173
      %p175 = scmp.ne.s32.totalorder %s163, %s164
      %p176 = scmp.eq.s32.totalorder %s26, 1
      %p177 = por %p175, %p176
      %p179 = scmp.ne.s32.totalorder %s164, %s178
      %p180 = scmp.eq.s32.totalorder %s26, 0
      %p181 = por %p179, %p180
      %s183 = sadd.s32 %s182, 1
      %p186 = scmp.eq.s32.totalorder %s20, 1
      %p187 = scmp.ne.s32.totalorder %s182, %s184
      %p188 = scmp.eq.s32.totalorder %s20, 0
      %p189 = por %p187, %p188
      %p190 = scmp.ne.s32.totalorder %s182, %s184
      %p191 = scmp.eq.s32.totalorder %s25, 1
      %p192 = por %p190, %p191
      %p193 = scmp.ne.s32.totalorder %s184, %s185
      %p194 = scmp.eq.s32.totalorder %s25, 0
      %p195 = por %p193, %p194
      %p196 = scmp.ne.s32.totalorder %s184, %s185
      %p197 = scmp.eq.s32.totalorder %s26, 1
      %p198 = por %p196, %p197
      %p200 = scmp.ne.s32.totalorder %s185, %s199
      %p201 = scmp.eq.s32.totalorder %s26, 0
      %p202 = por %p200, %p201
      %s204 = sadd.s32 %s203, 1
      %p207 = scmp.eq.s32.totalorder %s20, 1
      %p208 = scmp.ne.s32.totalorder %s203, %s205
      %p209 = scmp.eq.s32.totalorder %s20, 0
      %p210 = por %p208, %p209
      %p211 = scmp.ne.s32.totalorder %s203, %s205
      %p212 = scmp.eq.s32.totalorder %s25, 1
      %p213 = por %p211, %p212
      %p214 = scmp.ne.s32.totalorder %s205, %s206
      %p215 = scmp.eq.s32.totalorder %s25, 0
      %p216 = por %p214, %p215
      %p217 = scmp.ne.s32.totalorder %s205, %s206
      %p218 = scmp.eq.s32.totalorder %s26, 1
      %p219 = por %p217, %p218
      %p221 = scmp.ne.s32.totalorder %s206, %s220
      %p222 = scmp.eq.s32.totalorder %s26, 0
      %p223 = por %p221, %p222
      %s224 = ssub.s32 %s27, %s39
      %s225 = ssub.s32 %s28, %s35
      %s226 = sor.u32 %s224, %s225
      %p227 = scmp.eq.s32.totalorder %s226, 0
      %s229 = sadd.s32 %s228, 1
      %s230 = scalar_select %p227, %s228, %s229
      %p233 = pneg %p227
      %p234 = scmp.eq.s32.totalorder %s20, 1
      %p235 = por %p233, %p234
      %p236 = scmp.ne.s32.totalorder %s228, %s231
      %p237 = scmp.eq.s32.totalorder %s20, 0
      %p238 = por %p236, %p237
      %p239 = scmp.ne.s32.totalorder %s228, %s231
      %p240 = scmp.eq.s32.totalorder %s25, 1
      %p241 = por %p239, %p240
      %p242 = scmp.ne.s32.totalorder %s231, %s232
      %p243 = scmp.eq.s32.totalorder %s25, 0
      %p244 = por %p242, %p243
      %p245 = scmp.ne.s32.totalorder %s231, %s232
      %p246 = scmp.eq.s32.totalorder %s26, 1
      %p247 = por %p245, %p246
      %p249 = scmp.ne.s32.totalorder %s232, %s248
      %p250 = scmp.eq.s32.totalorder %s26, 0
      %p251 = por %p249, %p250
      %p252 = scmp.le.s32.totalorder 1, %s20
      %p253 = scmp.lt.s32.totalorder %s20, 3
      %p254 = pnand %p252, %p253
      %p255 = pneg %p254
      // Predicated region
      $region9: #{tpu_custom_call.1} parent=5 // pred_check
        _
      $region10: #{tpu_custom_call.1} parent=5 // pred_check_branch
        %257 = sbr.rel (%p254) target = $region12
      $region11: #{tpu_custom_call.1} parent=5 // pred_region
        %s258 = ssub.s32 %s20, 1
        // Predicated region
        $region13: #{tpu_custom_call.1} parent=11 // pred_check
          %p259 = pneg %p111
        $region14: #{tpu_custom_call.1} parent=11 // pred_check_branch
          %261 = sbr.rel (%p259) target = $region16
        $region15: #{tpu_custom_call.1} parent=11 // pred_region
          _
        $region16: #{tpu_custom_call.1} parent=11 // pred_fallthru
          _
        // Predicated region
        $region17: #{tpu_custom_call.1} parent=11 // pred_check
          %p262 = pneg %p132
        $region18: #{tpu_custom_call.1} parent=11 // pred_check_branch
          %264 = sbr.rel (%p262) target = $region20
        $region19: #{tpu_custom_call.1} parent=11 // pred_region
          _
        $region20: #{tpu_custom_call.1} parent=11 // pred_fallthru
          _
        // Predicated region
        $region21: #{tpu_custom_call.1} parent=11 // pred_check
          %p265 = pneg %p153
        $region22: #{tpu_custom_call.1} parent=11 // pred_check_branch
          %267 = sbr.rel (%p265) target = $region24
        $region23: #{tpu_custom_call.1} parent=11 // pred_region
          _
        $region24: #{tpu_custom_call.1} parent=11 // pred_fallthru
          _
        // Predicated region
        $region25: #{tpu_custom_call.1} parent=11 // pred_check
          %p268 = pneg %p174
        $region26: #{tpu_custom_call.1} parent=11 // pred_check_branch
          %270 = sbr.rel (%p268) target = $region28
        $region27: #{tpu_custom_call.1} parent=11 // pred_region
          _
        $region28: #{tpu_custom_call.1} parent=11 // pred_fallthru
          _
        // Predicated region
        $region29: #{tpu_custom_call.1} parent=11 // pred_check
          %p271 = pneg %p195
        $region30: #{tpu_custom_call.1} parent=11 // pred_check_branch
          %273 = sbr.rel (%p271) target = $region32
        $region31: #{tpu_custom_call.1} parent=11 // pred_region
          _
        $region32: #{tpu_custom_call.1} parent=11 // pred_fallthru
          _
        // Predicated region
        $region33: #{tpu_custom_call.1} parent=11 // pred_check
          %p274 = pneg %p216
        $region34: #{tpu_custom_call.1} parent=11 // pred_check_branch
          %276 = sbr.rel (%p274) target = $region36
        $region35: #{tpu_custom_call.1} parent=11 // pred_region
          _
        $region36: #{tpu_custom_call.1} parent=11 // pred_fallthru
          _
      $region12: #{tpu_custom_call.1} parent=5 // pred_fallthru
        _
      %p277 = scmp.lt.s32.totalorder %s20, 2
      // Predicated region
      $region37: #{tpu_custom_call.1} parent=5 // pred_check
        %p278 = pneg %p277
      $region38: #{tpu_custom_call.1} parent=5 // pred_check_branch
        %280 = sbr.rel (%p278) target = $region40
      $region39: #{tpu_custom_call.1} parent=5 // pred_region
        // Predicated region
        $region41: #{tpu_custom_call.1} parent=39 // pred_check
          %p281 = pneg %p54
        $region42: #{tpu_custom_call.1} parent=39 // pred_check_branch
          %283 = sbr.rel (%p281) target = $region44
        $region43: #{tpu_custom_call.1} parent=39 // pred_region
          %p284 = scmp.lt.s32.totalorder %s27, 1
          %s285 = scalar_select %p284, %s27, 1
          %p286 = scmp.lt.s32.totalorder %s28, 1
          %s287 = scalar_select %p286, %s28, 1
          %s288 = smul.addr %s285, 2
          %s289 = sadd.s32 %s287, %s288
          %s290 = smul.addr %s289, 4
          %s291 = scalar_lea.vmem %s0, %s290
        $region44: #{tpu_custom_call.1} parent=39 // pred_fallthru
          _
        // Predicated region
        $region45: #{tpu_custom_call.1} parent=39 // pred_check
          %p292 = pneg %p84
        $region46: #{tpu_custom_call.1} parent=39 // pred_check_branch
          %294 = sbr.rel (%p292) target = $region48
        $region47: #{tpu_custom_call.1} parent=39 // pred_region
          %s295 = sand.u32 %s74, 1
          %s296 = scalar_lea.sflag [#allocation3], %s295
          %s297 = sand.u32 %s74, 1
          %s298 = smul.addr %s297, 4
          %s299 = scalar_lea.vmem [#allocation2], %s298
          %s300 = sadd.s32 %s28, 1
          %s302 = ssub.s32 64, 64
          %303 = vsyncadd %s296, %s302
          %s304 = smul.addr %s27, 2
          %s305 = sadd.s32 %s300, %s304
          %s306 = smul.addr %s305, 64
          %s307 = scalar_lea.hbm %s1, %s306
          %s309 = sshll.u32 %s299, 4
          %s310 = int_to_ptr.vmem [resolvable:$true] %s309
          %312 = dma.hbm_to_vmem [thread:$0]  %s307, 64, %s310, %s296
        $region48: #{tpu_custom_call.1} parent=39 // pred_fallthru
          _
      $region40: #{tpu_custom_call.1} parent=5 // pred_fallthru
        _
      %p313 = scmp.le.s32.totalorder 1, %s20
      %p314 = scmp.lt.s32.totalorder %s20, 3
      %p315 = pnand %p313, %p314
      %p316 = pneg %p315
      // Predicated region
      $region49: #{tpu_custom_call.1} parent=5 // pred_check
        _
      $region50: #{tpu_custom_call.1} parent=5 // pred_check_branch
        %318 = sbr.rel (%p315) target = $region52
      $region51: #{tpu_custom_call.1} parent=5 // pred_region
        %s319 = ssub.s32 %s20, 1
        %s320 = sand.u32 %s77, 1
        %s321 = scalar_lea.sflag [#allocation3], %s320
        %s322 = sand.u32 %s77, 1
        %s323 = smul.addr %s322, 4
        %s324 = scalar_lea.vmem [#allocation2], %s323
        // Predicated region
        $region53: #{tpu_custom_call.1} parent=51 // pred_check
          %p325 = pneg %p90
        $region54: #{tpu_custom_call.1} parent=51 // pred_check_branch
          %327 = sbr.rel (%p325) target = $region56
        $region55: #{tpu_custom_call.1} parent=51 // pred_region
          %328 = dma.done %s321, 64
        $region56: #{tpu_custom_call.1} parent=51 // pred_fallthru
          _
        %p329 = scmp.lt.s32.totalorder %s29, 1
        %s330 = scalar_select %p329, %s29, 1
        %p331 = scmp.lt.s32.totalorder %s30, 1
        %s332 = scalar_select %p331, %s30, 1
        %s333 = smul.addr %s330, 2
        %s334 = sadd.s32 %s332, %s333
        %s335 = smul.addr %s334, 4
        %s336 = scalar_lea.vmem %s0, %s335
        %p337 = pneg %p60
        %p338 = pneg %p57
        %s339 = sand.u32 %s77, 1
        %s340 = scalar_lea.sflag [#allocation3], %s339
        %s341 = sand.u32 %s77, 1
        %s342 = smul.addr %s341, 4
        %s343 = scalar_lea.vmem [#allocation2], %s342
        %p344 = pneg %p90
        %p345 = pneg %p87
        %p346 = pneg %p111
        %p347 = pneg %p108
        %p348 = pneg %p132
        %p349 = pneg %p129
        %p350 = pneg %p153
        %p351 = pneg %p150
        %p352 = pneg %p174
        %p353 = pneg %p171
        %p354 = pneg %p195
        %p355 = pneg %p192
        %p356 = pneg %p216
        %p357 = pneg %p213
        %p358 = pneg %p244
        %p359 = pneg %p241
        %s360 = sand.u32 %s231, 1
        %s361 = scalar_lea.sflag [#allocation4], %s360
        %s362 = sand.u32 %s231, 1
        %s363 = smul.addr %s362, 8
        %s364 = scalar_lea.vmem [#allocation5], %s363
        %p365 = scmp.lt.s32.totalorder %s29, 1
        %s366 = scalar_select %p365, %s29, 1
        %p367 = scmp.lt.s32.totalorder %s30, 1
        %s368 = scalar_select %p367, %s30, 1
        %s369 = smul.addr %s366, 2
        %s370 = sadd.s32 %s368, %s369
        %s371 = smul.addr %s370, 4
        %s372 = scalar_lea.vmem %s0, %s371
        %s373 = sadd.s32 %s30, 1
        %v374 = vld [vmem:[%s372] sm:$0xf]
        %v375 = vld [vmem:[%s324] sm:$0xf]
        %376 = vrot.lane.b32.xlu0 %v374, 127
        %v377 = vpop.permute.xlu0 %376
        %378 = vrot.lane.b32.xlu0 %v375, 127
        %v379 = vpop.permute.xlu0 %378
        %v380 = vlaneseq
        %v381 = vand.u32 %v380, 127
        %vm382 = vcmp.lt.s32.totalorder %v381, 127
        %v383 = vsel %vm382, %v377, %v379
        %v384 = vsel %vm382, %v379, %v377
        %385 = vrot.lane.b32.xlu0 %v374, 126
        %v386 = vpop.permute.xlu0 %385
        %387 = vrot.lane.b32.xlu0 %v375, 126
        %v388 = vpop.permute.xlu0 %387
        %vm389 = vcmp.lt.s32.totalorder %v381, 126
        %v390 = vsel %vm389, %v386, %v388
        %v391 = vsel %vm389, %v388, %v386
        %392 = vrot.lane.b32.xlu0 %v374, 125
        %v393 = vpop.permute.xlu0 %392
        %394 = vrot.lane.b32.xlu0 %v375, 125
        %v395 = vpop.permute.xlu0 %394
        %vm396 = vcmp.lt.s32.totalorder %v381, 125
        %v397 = vsel %vm396, %v393, %v395
        %v398 = vsel %vm396, %v395, %v393
        %v401 = vrot.slane %v383, 4
        %v402 = vrot.slane %v384, 4
        %v407 = vrot.slane %v397, 4
        %v408 = vrot.slane %v398, 4
        %vm411 = vcmask 1043456
        %v412 = vsel %vm411, %v374, %v401
        %v413 = vsel %vm411, %v375, %v402
        %v414 = vsel %vm411, %v390, %v407
        %v415 = vsel %vm411, %v391, %v408
        %v416 = vld [vmem:[%s2] sm:$0xff]
        %v417 = vld [vmem:[%s3] sm:$0xff]
        %419 = vset.pattern.permute.xlu0 0
        %420 = vperm.xlu0 %419, %v417
        %v421 = vpop.permute.xlu0 %420
        %vm423 = vcmask 130048
        %v425 = vsel %vm423, %v416, 0
        %427 = vmatprep.subr.mxu0 %v413
        %428 = vmatpush1.msra.mxu0 %v412
        %429 = vmatprep.subr.mxu0 %v415
        %430 = vmatpush1.msra.mxu0 %v414
        %431 = vmatprep.subr.mxu0 0.0
        %432 = vmatpush1.msra.mxu0 0.0
        %433 = vmatprep.subr.mxu0 0.0
        %434 = vmatpush1.msra.mxu0 0.0
        %435 = vmatprep.subr.mxu0 0.0
        %436 = vmatpush1.msra.mxu0 0.0
        %437 = vmatprep.subr.mxu0 0.0
        %438 = vmatpush1.msra.mxu0 0.0
        %439 = vmatprep.subr.mxu0 0.0
        %440 = vmatpush1.msra.mxu0 0.0
        %441 = vmatprep.subr.mxu0 0.0
        %442 = vmatpush1.msra.mxu0 0.0
        %443 = vmatprep.subr.mxu0 0.0
        %444 = vmatpush1.msra.mxu0 0.0
        %445 = vmatprep.subr.mxu0 0.0
        %446 = vmatpush1.msra.mxu0 0.0
        %447 = vmatprep.subr.mxu0 0.0
        %448 = vmatpush1.msra.mxu0 0.0
        %449 = vmatprep.subr.mxu0 0.0
        %450 = vmatpush1.msra.mxu0 0.0
        %451 = vmatprep.subr.mxu0 0.0
        %452 = vmatpush1.msra.mxu0 0.0
        %453 = vmatprep.subr.mxu0 0.0
        %454 = vmatpush1.msra.mxu0 0.0
        %455 = vmatprep.subr.mxu0 0.0
        %456 = vmatpush1.msra.mxu0 0.0
        %457 = vmatprep.subr.mxu0 0.0
        %458 = vmatpush1.msra.mxu0 0.0
        %459 = vmatprep.subr.mxu0 0.0
        %460 = vmatpush1.msra.mxu0 0.0
        %461 = vmatprep.subr.mxu0 0.0
        %462 = vmatpush1.msra.mxu0 0.0
        %463 = vmatprep.subr.mxu0 0.0
        %464 = vmatpush1.msra.mxu0 0.0
        %465 = vmatprep.subr.mxu0 0.0
        %466 = vmatpush1.msra.mxu0 0.0
        %467 = vmatprep.subr.mxu0 0.0
        %468 = vmatpush1.msra.mxu0 0.0
        %469 = vmatprep.subr.mxu0 0.0
        %470 = vmatpush1.msra.mxu0 0.0
        %471 = vmatprep.subr.mxu0 0.0
        %472 = vmatpush1.msra.mxu0 0.0
        %473 = vmatprep.subr.mxu0 0.0
        %474 = vmatpush1.msra.mxu0 0.0
        %475 = vmatprep.subr.mxu0 0.0
        %476 = vmatpush1.msra.mxu0 0.0
        %477 = vmatprep.subr.mxu0 0.0
        %478 = vmatpush1.msra.mxu0 0.0
        %479 = vmatprep.subr.mxu0 0.0
        %480 = vmatpush1.msra.mxu0 0.0
        %481 = vmatprep.subr.mxu0 0.0
        %482 = vmatpush1.msra.mxu0 0.0
        %483 = vmatprep.subr.mxu0 0.0
        %484 = vmatpush1.msra.mxu0 0.0
        %485 = vmatprep.subr.mxu0 0.0
        %486 = vmatpush1.msra.mxu0 0.0
        %487 = vmatprep.subr.mxu0 0.0
        %488 = vmatpush1.msra.mxu0 0.0
        %489 = vmatprep.subr.mxu0 0.0
        %490 = vmatpush1.msra.mxu0 0.0
        %491 = vmatprep.mubr.f32.mxu0 0.0
        %492 = vmatmul.mubr.f32.gmra.mrb[0].mxu0 %v425
        %v493 = vpop.f32.mrb[0].mxu0
        %v494 = vadd.f32 %v421, %v493
        %v495 = vpop.f32.mrb[0].mxu0
        %v496 = vadd.f32 %v421, %v495
        %497 = vdwg.mxu0
        %v498 = vmax.f32 %v494, 0.0
        %v499 = vmax.f32 %v496, 0.0
        %v500 = vadd.s32 %v381, 128
        %s501 = smul.u32 %s30, 128
        %v502 = vstv %s501
        %v503 = vadd.s32 %v502, %v381
        %v504 = vadd.s32 %v502, %v500
        %v505 = vsub.s32 %v503, 1
        %v506 = vsub.s32 %v504, 1
        %vm507 = vcmp.ge.s32.totalorder %v505, 0
        %vm508 = vcmp.ge.s32.totalorder %v506, 0
        %vm509 = vcmp.lt.s32.totalorder %v505, 16
        %vm510 = vcmp.lt.s32.totalorder %v506, 16
        %vm511 = vmand %vm507, %vm509
        %vm512 = vmand %vm508, %vm510
        %v513 = vsel %vm511, 1, 0
        %v514 = vsel %vm512, 1, 0
        %vm515 = vcmp.eq.s32.totalorder %v513, 1
        %vm516 = vcmp.eq.s32.totalorder %v514, 1
        %v517 = vsel %vm515, %v498, 0.0
        %v518 = vsel %vm516, %v499, 0.0
        %519 = vrot.lane.b32.xlu0 %v517, 127
        %v520 = vpop.permute.xlu0 %519
        %521 = vrot.lane.b32.xlu0 %v518, 127
        %v522 = vpop.permute.xlu0 %521
        %v523 = vsel %vm382, %v520, %v522
        %524 = vrot.lane.b32.xlu0 %v517, 126
        %v525 = vpop.permute.xlu0 %524
        %526 = vrot.lane.b32.xlu0 %v518, 126
        %v527 = vpop.permute.xlu0 %526
        %v528 = vsel %vm389, %v525, %v527
        %529 = vrot.lane.b32.xlu0 %v517, 125
        %v530 = vpop.permute.xlu0 %529
        %531 = vrot.lane.b32.xlu0 %v518, 125
        %v532 = vpop.permute.xlu0 %531
        %v533 = vsel %vm396, %v530, %v532
        %v534 = vld [vmem:[%s4] sm:$0xff]
        %v535 = vld [vmem:[%s5] sm:$0xff]
        %537 = vset.pattern.permute.xlu0 0
        %538 = vperm.xlu0 %537, %v535
        %v539 = vpop.permute.xlu0 %538
        %vm541 = vcmask 261120
        %v543 = vsel %vm541, %v534, 0
        %545 = vmatprep.subr.mxu0 0.0
        %546 = vmatpush1.msra.mxu0 %v517
        %547 = vmatprep.subr.mxu0 0.0
        %548 = vmatpush1.msra.mxu0 %v523
        %549 = vmatprep.subr.mxu0 0.0
        %550 = vmatpush1.msra.mxu0 %v528
        %551 = vmatprep.subr.mxu0 0.0
        %552 = vmatpush1.msra.mxu0 %v533
        %553 = vmatprep.subr.mxu0 0.0
        %554 = vmatpush1.msra.mxu0 0.0
        %555 = vmatprep.subr.mxu0 0.0
        %556 = vmatpush1.msra.mxu0 0.0
        %557 = vmatprep.subr.mxu0 0.0
        %558 = vmatpush1.msra.mxu0 0.0
        %559 = vmatprep.subr.mxu0 0.0
        %560 = vmatpush1.msra.mxu0 0.0
        %561 = vmatprep.subr.mxu0 0.0
        %562 = vmatpush1.msra.mxu0 0.0
        %563 = vmatprep.subr.mxu0 0.0
        %564 = vmatpush1.msra.mxu0 0.0
        %565 = vmatprep.subr.mxu0 0.0
        %566 = vmatpush1.msra.mxu0 0.0
        %567 = vmatprep.subr.mxu0 0.0
        %568 = vmatpush1.msra.mxu0 0.0
        %569 = vmatprep.subr.mxu0 0.0
        %570 = vmatpush1.msra.mxu0 0.0
        %571 = vmatprep.subr.mxu0 0.0
        %572 = vmatpush1.msra.mxu0 0.0
        %573 = vmatprep.subr.mxu0 0.0
        %574 = vmatpush1.msra.mxu0 0.0
        %575 = vmatprep.subr.mxu0 0.0
        %576 = vmatpush1.msra.mxu0 0.0
        %577 = vmatprep.subr.mxu0 0.0
        %578 = vmatpush1.msra.mxu0 0.0
        %579 = vmatprep.subr.mxu0 0.0
        %580 = vmatpush1.msra.mxu0 0.0
        %581 = vmatprep.subr.mxu0 0.0
        %582 = vmatpush1.msra.mxu0 0.0
        %583 = vmatprep.subr.mxu0 0.0
        %584 = vmatpush1.msra.mxu0 0.0
        %585 = vmatprep.subr.mxu0 0.0
        %586 = vmatpush1.msra.mxu0 0.0
        %587 = vmatprep.subr.mxu0 0.0
        %588 = vmatpush1.msra.mxu0 0.0
        %589 = vmatprep.subr.mxu0 0.0
        %590 = vmatpush1.msra.mxu0 0.0
        %591 = vmatprep.subr.mxu0 0.0
        %592 = vmatpush1.msra.mxu0 0.0
        %593 = vmatprep.subr.mxu0 0.0
        %594 = vmatpush1.msra.mxu0 0.0
        %595 = vmatprep.subr.mxu0 0.0
        %596 = vmatpush1.msra.mxu0 0.0
        %597 = vmatprep.subr.mxu0 0.0
        %598 = vmatpush1.msra.mxu0 0.0
        %599 = vmatprep.subr.mxu0 0.0
        %600 = vmatpush1.msra.mxu0 0.0
        %601 = vmatprep.subr.mxu0 0.0
        %602 = vmatpush1.msra.mxu0 0.0
        %603 = vmatprep.subr.mxu0 0.0
        %604 = vmatpush1.msra.mxu0 0.0
        %605 = vmatprep.subr.mxu0 0.0
        %606 = vmatpush1.msra.mxu0 0.0
        %607 = vmatprep.subr.mxu0 0.0
        %608 = vmatpush1.msra.mxu0 0.0
        %609 = vmatprep.mubr.f32.mxu0 0.0
        %610 = vmatmul.mubr.f32.gmra.mrb[0].mxu0 %v543
        %v611 = vpop.f32.mrb[0].mxu0
        %v612 = vadd.f32 %v539, %v611
        %v613 = vpop.f32.mrb[0].mxu0
        %614 = vdwg.mxu0
        %v615 = vld [vmem:[%s6] sm:$0xff]
        %v616 = vld [vmem:[%s7] sm:$0xff]
        %618 = vset.pattern.permute.xlu0 0
        %619 = vperm.xlu0 %618, %v616
        %v620 = vpop.permute.xlu0 %619
        %v623 = vsel %vm541, %v615, 0
        %625 = vmatprep.subr.mxu0 0.0
        %626 = vmatpush1.msra.mxu0 %v517
        %627 = vmatprep.subr.mxu0 0.0
        %628 = vmatpush1.msra.mxu0 %v523
        %629 = vmatprep.subr.mxu0 0.0
        %630 = vmatpush1.msra.mxu0 %v528
        %631 = vmatprep.subr.mxu0 0.0
        %632 = vmatpush1.msra.mxu0 %v533
        %633 = vmatprep.subr.mxu0 0.0
        %634 = vmatpush1.msra.mxu0 0.0
        %635 = vmatprep.subr.mxu0 0.0
        %636 = vmatpush1.msra.mxu0 0.0
        %637 = vmatprep.subr.mxu0 0.0
        %638 = vmatpush1.msra.mxu0 0.0
        %639 = vmatprep.subr.mxu0 0.0
        %640 = vmatpush1.msra.mxu0 0.0
        %641 = vmatprep.subr.mxu0 0.0
        %642 = vmatpush1.msra.mxu0 0.0
        %643 = vmatprep.subr.mxu0 0.0
        %644 = vmatpush1.msra.mxu0 0.0
        %645 = vmatprep.subr.mxu0 0.0
        %646 = vmatpush1.msra.mxu0 0.0
        %647 = vmatprep.subr.mxu0 0.0
        %648 = vmatpush1.msra.mxu0 0.0
        %649 = vmatprep.subr.mxu0 0.0
        %650 = vmatpush1.msra.mxu0 0.0
        %651 = vmatprep.subr.mxu0 0.0
        %652 = vmatpush1.msra.mxu0 0.0
        %653 = vmatprep.subr.mxu0 0.0
        %654 = vmatpush1.msra.mxu0 0.0
        %655 = vmatprep.subr.mxu0 0.0
        %656 = vmatpush1.msra.mxu0 0.0
        %657 = vmatprep.subr.mxu0 0.0
        %658 = vmatpush1.msra.mxu0 0.0
        %659 = vmatprep.subr.mxu0 0.0
        %660 = vmatpush1.msra.mxu0 0.0
        %661 = vmatprep.subr.mxu0 0.0
        %662 = vmatpush1.msra.mxu0 0.0
        %663 = vmatprep.subr.mxu0 0.0
        %664 = vmatpush1.msra.mxu0 0.0
        %665 = vmatprep.subr.mxu0 0.0
        %666 = vmatpush1.msra.mxu0 0.0
        %667 = vmatprep.subr.mxu0 0.0
        %668 = vmatpush1.msra.mxu0 0.0
        %669 = vmatprep.subr.mxu0 0.0
        %670 = vmatpush1.msra.mxu0 0.0
        %671 = vmatprep.subr.mxu0 0.0
        %672 = vmatpush1.msra.mxu0 0.0
        %673 = vmatprep.subr.mxu0 0.0
        %674 = vmatpush1.msra.mxu0 0.0
        %675 = vmatprep.subr.mxu0 0.0
        %676 = vmatpush1.msra.mxu0 0.0
        %677 = vmatprep.subr.mxu0 0.0
        %678 = vmatpush1.msra.mxu0 0.0
        %679 = vmatprep.subr.mxu0 0.0
        %680 = vmatpush1.msra.mxu0 0.0
        %681 = vmatprep.subr.mxu0 0.0
        %682 = vmatpush1.msra.mxu0 0.0
        %683 = vmatprep.subr.mxu0 0.0
        %684 = vmatpush1.msra.mxu0 0.0
        %685 = vmatprep.subr.mxu0 0.0
        %686 = vmatpush1.msra.mxu0 0.0
        %687 = vmatprep.subr.mxu0 0.0
        %688 = vmatpush1.msra.mxu0 0.0
        %689 = vmatprep.mubr.f32.mxu0 0.0
        %690 = vmatmul.mubr.f32.gmra.mrb[0].mxu0 %v623
        %v691 = vpop.f32.mrb[0].mxu0
        %v692 = vadd.f32 %v620, %v691
        %v693 = vpop.f32.mrb[0].mxu0
        %694 = vdwg.mxu0
        %v695 = vxor.u32 %v692, 2147483648
        %v696 = vmul.f32 %v695, 1.442695
        %v697 = vpow.pop %v696
        %v698 = vadd.f32 %v697, 1.0
        %v699 = vrcp.pop %v698
        %v700 = vmul.f32 1.0, %v699
        %v701 = vmul.f32 %v612, %v700
        %702 = vst [vmem:[%s364] sm:$0xff] %v701
        %s703 = sand.u32 %s231, 1
        %s704 = scalar_lea.sflag [#allocation4], %s703
        %s705 = sand.u32 %s231, 1
        %s706 = smul.addr %s705, 8
        %s707 = scalar_lea.vmem [#allocation5], %s706
        // Predicated region
        $region57: #{tpu_custom_call.1} parent=51 // pred_check
          %p708 = pneg %p241
        $region58: #{tpu_custom_call.1} parent=51 // pred_check_branch
          %710 = sbr.rel (%p708) target = $region60
        $region59: #{tpu_custom_call.1} parent=51 // pred_region
          %s712 = ssub.s32 128, 128
          %713 = vsyncadd %s704, %s712
          %s714 = sadd.s32 %s30, %s29
          %s715 = smul.addr %s714, 128
          %s716 = scalar_lea.hbm %s8, %s715
          %s718 = sshll.u32 %s707, 4
          %s719 = int_to_ptr.vmem [resolvable:$true] %s718
          %721 = dma.vmem_to_hbm [thread:$0]  %s719, 128, %s716, %s704
        $region60: #{tpu_custom_call.1} parent=51 // pred_fallthru
          _
      $region52: #{tpu_custom_call.1} parent=5 // pred_fallthru
        _
      %p722 = scmp.le.s32.totalorder 2, %s20
      // Predicated region
      $region61: #{tpu_custom_call.1} parent=5 // pred_check
        %p723 = pneg %p722
      $region62: #{tpu_custom_call.1} parent=5 // pred_check_branch
        %725 = sbr.rel (%p723) target = $region64
      $region63: #{tpu_custom_call.1} parent=5 // pred_region
        %s726 = ssub.s32 %s20, 2
        // Predicated region
        $region65: #{tpu_custom_call.1} parent=63 // pred_check
          %p727 = pneg %p247
        $region66: #{tpu_custom_call.1} parent=63 // pred_check_branch
          %729 = sbr.rel (%p727) target = $region68
        $region67: #{tpu_custom_call.1} parent=63 // pred_region
          %s730 = sand.u32 %s232, 1
          %s731 = scalar_lea.sflag [#allocation4], %s730
          %s732 = sand.u32 %s232, 1
          %s733 = smul.addr %s732, 8
          %s734 = scalar_lea.vmem [#allocation5], %s733
          %735 = dma.done %s731, 128
        $region68: #{tpu_custom_call.1} parent=63 // pred_fallthru
          _
      $region64: #{tpu_custom_call.1} parent=5 // pred_fallthru
        _
    $region6: #{tpu_custom_call.1} parent=1 // loop_footer
      %s24 = sadd.s32 1, %s20
    $region7: #{tpu_custom_call.1} parent=1 // loop_footer_branch
      %19 = sbr.rel target = $region3
    $region8: #{tpu_custom_call.1} parent=1 // loop_exit
      _
    %736 = vsyncpa [#allocation3], 1
    %s737 = scalar_lea.sflag [#allocation3], 1
    %738 = vsyncpa %s737, 1
    %739 = vsyncpa [#allocation4], 1
    %s740 = scalar_lea.sflag [#allocation4], 1
    %741 = vsyncpa %s740, 1

</llo_original>
